<compile_context>
chip_gen: v5e
topology: v5e:2x2
jax: 0.10.0
libtpu: 0.0.40
codegen_flags: <defaults>
</compile_context>

<pallas_src>
import jax
import jax.numpy as jnp
from jax.experimental import pallas as pl
from jax.experimental.pallas import tpu as pltpu

_LANES = 128


def _temporal_pool_kernel(x_ref, o_ref):
    """Temporal max-pool (k=3, s=2, p=1) along the time axis (block axis 1).

    x_ref: (b_tile, n_segment, r_tile, 128)
    o_ref: (b_tile, t_out,     r_tile, 128)

    Time lives on a leading (untiled) axis, so every load/store below is a
    dense (r_tile, 128) slab: pure address math, no sublane shuffles, no
    masked stores, fully dense output DMA.
    """
    t_out = o_ref.shape[1]
    for t in range(t_out):                       # static unroll; t_out is small
        res = jnp.maximum(x_ref[:, 2 * t, :, :],       # x[2t]
                          x_ref[:, 2 * t + 1, :, :])   # x[2t+1]
        if t > 0:
            # x[2t-1]; for t == 0 that slot is the -inf pool padding frame,
            # which never contributes, so it is simply omitted.
            res = jnp.maximum(res, x_ref[:, 2 * t - 1, :, :])
        o_ref[:, t, :, :] = res


def _divisors(n):
    return [d for d in range(1, n + 1) if n % d == 0]


def _choose_tiles(n_batch, n_segment, t_out, n_rows, itemsize,
                  target_block_bytes=6 << 20):
    """Pick (b_tile, r_tile) for blocks (b_tile, n_segment, r_tile, 128).

    Aims for multi-MiB (input+output) blocks per grid step (this kernel is
    pure HBM streaming; small tiles leave 15-40% of roofline on the table)
    while keeping >=2 parallel grid steps so both v7x TensorCores are fed.
    """
    unit = (n_segment + t_out) * _LANES * itemsize   # in+out bytes per (b, row)

    # r_tile: a multiple of 8 that divides n_rows, or n_rows itself (the
    # second-to-last block dim is always legal when equal to the array dim).
    r_choices = [d for d in range(8, n_rows, 8) if n_rows % d == 0] + [n_rows]
    fitting = [r for r in r_choices if r * unit <= target_block_bytes]
    r_tile = max(fitting) if fitting else min(r_choices)

    # b_tile: if one batch element's rows all fit, group several batch
    # elements per step so small-chw shapes still issue large DMAs.
    b_tile = 1
    if r_tile == n_rows:
        b_fitting = [b for b in _divisors(n_batch)
                     if b * n_rows * unit <= target_block_bytes]
        if b_fitting:
            b_tile = max(b_fitting)

    # Keep >=2 grid steps (megacore sharding on v7x) whenever possible.
    if (n_batch // b_tile) * (n_rows // r_tile) < 2:
        smaller_b = [b for b in _divisors(n_batch) if b < b_tile]
        smaller_r = [r for r in r_choices if r < r_tile]
        if smaller_b:
            b_tile = max(smaller_b)
        elif smaller_r:
            r_tile = max(smaller_r)
    return b_tile, r_tile


def temporal_pool(x, n_segment):
    """Equivalent of TemporalPool.temporal_pool(x, n_segment) for NCHW input."""
    nt, c, h, w = x.shape
    assert nt % n_segment == 0, "nt must be divisible by n_segment"
    # PyTorch's final `.view(nt // 2, ...)` imposes the same constraint.
    assert n_segment % 2 == 0, "TemporalPool requires an even n_segment"
    n_batch = nt // n_segment
    t_out = n_segment // 2
    chw = c * h * w
    itemsize = jnp.dtype(x.dtype).itemsize

    # Lane-dense layout: (n_batch, n_segment, rows, 128) with time on a
    # leading axis.  Pooling only touches the temporal axis, so this is
    # identical to PyTorch's transpose -> pool(dim 2) -> transpose-back.
    pad = (-chw) % _LANES
    x3 = x.reshape(n_batch, n_segment, chw)
    if pad:
        # Rare fallback (chw not a multiple of 128): pad the feature axis;
        # padded lanes are pooled independently and sliced off below.
        x3 = jnp.pad(x3, ((0, 0), (0, 0), (0, pad)))
    n_rows = (chw + pad) // _LANES
    x4 = x3.reshape(n_batch, n_segment, n_rows, _LANES)

    b_tile, r_tile = _choose_tiles(n_batch, n_segment, t_out, n_rows, itemsize)
    grid = (n_batch // b_tile, n_rows // r_tile)

    in_block = b_tile * n_segment * r_tile * _LANES * itemsize
    out_block = b_tile * t_out * r_tile * _LANES * itemsize
    working_set = 2 * (in_block + out_block)          # double-buffered in + out
    vmem_limit = max(working_set + (8 << 20), 16 << 20)
    try:  # cap against this generation's physical VMEM (64 MiB/TC on v7x)
        vmem_cap = getattr(pltpu.get_tpu_info(), "vmem_capacity_bytes", 64 << 20)
    except Exception:
        vmem_cap = 64 << 20
    vmem_limit = int(min(vmem_limit,
                         max(vmem_cap // 2, working_set + (1 << 20))))

    cost = pl.CostEstimate(
        flops=2 * n_batch * t_out * n_rows * _LANES,   # ~2 compares per output
        transcendentals=0,
        bytes_accessed=n_batch * (n_segment + t_out) * n_rows * _LANES * itemsize,
    )

    out4 = pl.pallas_call(
        _temporal_pool_kernel,
        out_shape=jax.ShapeDtypeStruct((n_batch, t_out, n_rows, _LANES), x.dtype),
        grid_spec=pltpu.PrefetchScalarGridSpec(
            num_scalar_prefetch=0,
            grid=grid,
            in_specs=[pl.BlockSpec((b_tile, n_segment, r_tile, _LANES),
                                   lambda b, j: (b, 0, j, 0))],
            out_specs=pl.BlockSpec((b_tile, t_out, r_tile, _LANES),
                                   lambda b, j: (b, 0, j, 0)),
        ),
        compiler_params=pltpu.CompilerParams(
            dimension_semantics=("parallel", "parallel"),
            vmem_limit_bytes=vmem_limit),
        cost_estimate=cost,
    )(x4)

    out = out4.reshape(n_batch, t_out, n_rows * _LANES)
    if pad:
        out = out[:, :, :chw]
    return out.reshape(n_batch * t_out, c, h, w)


class TemporalPoolJax:
    """Mirror of the PyTorch TemporalPool module."""

    def __init__(self, net, n_segment):
        self.net = net
        self.n_segment = n_segment

    def __call__(self, x):
        x = temporal_pool(x, self.n_segment)
        return self.net(x)


if __name__ == "__main__":
    key = jax.random.PRNGKey(0)
    nt, c, h, w = 16, 4, 16, 16          # n_batch=2, n_segment=8, chw=1024
    n_segment = 8
    x = jax.random.normal(key, (nt, c, h, w), dtype=jnp.float32)

    # TODO(synk): `self.net` is an arbitrary wrapped backbone in the PyTorch
    # code (external to TemporalPool); identity is used here.
    mod = TemporalPoolJax(net=lambda y: y, n_segment=n_segment)
    y = jax.block_until_ready(mod(x))

    # plain-JAX reference (k=3, s=2, p=1 temporal max-pool, boundary-clamped)
    n_batch = nt // n_segment
    t_out = n_segment // 2
    xr = x.reshape(n_batch, n_segment, c, h, w)
    ref = jnp.stack(
        [jnp.max(xr[:, max(2 * t - 1, 0):2 * t + 2], axis=1)
         for t in range(t_out)], axis=1).reshape(n_batch * t_out, c, h, w)

    assert y.shape == (nt // 2, c, h, w)
    assert y.dtype == x.dtype
    assert jnp.allclose(y, ref)
    print("KERNEL_OK")
</pallas_src>

<mosaic_0001>
module attributes {stable_mosaic.version = 11 : i64} {
  func.func @_temporal_pool_kernel(%arg0: i32, %arg1: i32, %arg2: memref<1x8x8x128xf32, #tpu.memory_space<vmem>>, %arg3: memref<1x4x8x128xf32, #tpu.memory_space<vmem>>) attributes {dimension_semantics = [#tpu.dimension_semantics<parallel>, #tpu.dimension_semantics<parallel>], iteration_bounds = array<i64: 2, 1>, scalar_prefetch = 0 : i64, scratch_operands = 0 : i64, tpu.core_type = #tpu.core_type<tc>, window_params = [{transform_indices = @transform_0, window_bounds = array<i64: 1, 8, 8, 128>}, {transform_indices = @transform_1, window_bounds = array<i64: 1, 4, 8, 128>}]} {
    %c0 = arith.constant 0 : index
    %c0_0 = arith.constant 0 : index
    %c0_1 = arith.constant 0 : index
    %c0_2 = arith.constant 0 : index
    %0 = vector.load %arg2[%c0, %c0_0, %c0_1, %c0_2] : memref<1x8x8x128xf32, #tpu.memory_space<vmem>>, vector<1x1x8x128xf32>
    %1 = vector.shape_cast %0 : vector<1x1x8x128xf32> to vector<1x8x128xf32>
    %c0_3 = arith.constant 0 : index
    %c1 = arith.constant 1 : index
    %c0_4 = arith.constant 0 : index
    %c0_5 = arith.constant 0 : index
    %2 = vector.load %arg2[%c0_3, %c1, %c0_4, %c0_5] : memref<1x8x8x128xf32, #tpu.memory_space<vmem>>, vector<1x1x8x128xf32>
    %3 = vector.shape_cast %2 : vector<1x1x8x128xf32> to vector<1x8x128xf32>
    %4 = arith.maximumf %1, %3 : vector<1x8x128xf32>
    %c0_6 = arith.constant 0 : index
    %c0_7 = arith.constant 0 : index
    %c0_8 = arith.constant 0 : index
    %c0_9 = arith.constant 0 : index
    %5 = vector.load %arg3[%c0_6, %c0_7, %c0_8, %c0_9] : memref<1x4x8x128xf32, #tpu.memory_space<vmem>>, vector<1x1x8x128xf32>
    %6 = vector.shape_cast %5 : vector<1x1x8x128xf32> to vector<1x8x128xf32>
    %7 = vector.shape_cast %4 : vector<1x8x128xf32> to vector<1x1x8x128xf32>
    tpu.vector_store %arg3[%c0_6, %c0_7, %c0_8, %c0_9], %7 {strides = array<i32>} : memref<1x4x8x128xf32, #tpu.memory_space<vmem>>, vector<1x1x8x128xf32>,
    %c0_10 = arith.constant 0 : index
    %c2 = arith.constant 2 : index
    %c0_11 = arith.constant 0 : index
    %c0_12 = arith.constant 0 : index
    %8 = vector.load %arg2[%c0_10, %c2, %c0_11, %c0_12] : memref<1x8x8x128xf32, #tpu.memory_space<vmem>>, vector<1x1x8x128xf32>
    %9 = vector.shape_cast %8 : vector<1x1x8x128xf32> to vector<1x8x128xf32>
    %c0_13 = arith.constant 0 : index
    %c3 = arith.constant 3 : index
    %c0_14 = arith.constant 0 : index
    %c0_15 = arith.constant 0 : index
    %10 = vector.load %arg2[%c0_13, %c3, %c0_14, %c0_15] : memref<1x8x8x128xf32, #tpu.memory_space<vmem>>, vector<1x1x8x128xf32>
    %11 = vector.shape_cast %10 : vector<1x1x8x128xf32> to vector<1x8x128xf32>
    %12 = arith.maximumf %9, %11 : vector<1x8x128xf32>
    %c0_16 = arith.constant 0 : index
    %c1_17 = arith.constant 1 : index
    %c0_18 = arith.constant 0 : index
    %c0_19 = arith.constant 0 : index
    %13 = vector.load %arg2[%c0_16, %c1_17, %c0_18, %c0_19] : memref<1x8x8x128xf32, #tpu.memory_space<vmem>>, vector<1x1x8x128xf32>
    %14 = vector.shape_cast %13 : vector<1x1x8x128xf32> to vector<1x8x128xf32>
    %15 = arith.maximumf %12, %14 : vector<1x8x128xf32>
    %c0_20 = arith.constant 0 : index
    %c1_21 = arith.constant 1 : index
    %c0_22 = arith.constant 0 : index
    %c0_23 = arith.constant 0 : index
    %16 = vector.load %arg3[%c0_20, %c1_21, %c0_22, %c0_23] : memref<1x4x8x128xf32, #tpu.memory_space<vmem>>, vector<1x1x8x128xf32>
    %17 = vector.shape_cast %16 : vector<1x1x8x128xf32> to vector<1x8x128xf32>
    %18 = vector.shape_cast %15 : vector<1x8x128xf32> to vector<1x1x8x128xf32>
    tpu.vector_store %arg3[%c0_20, %c1_21, %c0_22, %c0_23], %18 {strides = array<i32>} : memref<1x4x8x128xf32, #tpu.memory_space<vmem>>, vector<1x1x8x128xf32>,
    %c0_24 = arith.constant 0 : index
    %c4 = arith.constant 4 : index
    %c0_25 = arith.constant 0 : index
    %c0_26 = arith.constant 0 : index
    %19 = vector.load %arg2[%c0_24, %c4, %c0_25, %c0_26] : memref<1x8x8x128xf32, #tpu.memory_space<vmem>>, vector<1x1x8x128xf32>
    %20 = vector.shape_cast %19 : vector<1x1x8x128xf32> to vector<1x8x128xf32>
    %c0_27 = arith.constant 0 : index
    %c5 = arith.constant 5 : index
    %c0_28 = arith.constant 0 : index
    %c0_29 = arith.constant 0 : index
    %21 = vector.load %arg2[%c0_27, %c5, %c0_28, %c0_29] : memref<1x8x8x128xf32, #tpu.memory_space<vmem>>, vector<1x1x8x128xf32>
    %22 = vector.shape_cast %21 : vector<1x1x8x128xf32> to vector<1x8x128xf32>
    %23 = arith.maximumf %20, %22 : vector<1x8x128xf32>
    %c0_30 = arith.constant 0 : index
    %c3_31 = arith.constant 3 : index
    %c0_32 = arith.constant 0 : index
    %c0_33 = arith.constant 0 : index
    %24 = vector.load %arg2[%c0_30, %c3_31, %c0_32, %c0_33] : memref<1x8x8x128xf32, #tpu.memory_space<vmem>>, vector<1x1x8x128xf32>
    %25 = vector.shape_cast %24 : vector<1x1x8x128xf32> to vector<1x8x128xf32>
    %26 = arith.maximumf %23, %25 : vector<1x8x128xf32>
    %c0_34 = arith.constant 0 : index
    %c2_35 = arith.constant 2 : index
    %c0_36 = arith.constant 0 : index
    %c0_37 = arith.constant 0 : index
    %27 = vector.load %arg3[%c0_34, %c2_35, %c0_36, %c0_37] : memref<1x4x8x128xf32, #tpu.memory_space<vmem>>, vector<1x1x8x128xf32>
    %28 = vector.shape_cast %27 : vector<1x1x8x128xf32> to vector<1x8x128xf32>
    %29 = vector.shape_cast %26 : vector<1x8x128xf32> to vector<1x1x8x128xf32>
    tpu.vector_store %arg3[%c0_34, %c2_35, %c0_36, %c0_37], %29 {strides = array<i32>} : memref<1x4x8x128xf32, #tpu.memory_space<vmem>>, vector<1x1x8x128xf32>,
    %c0_38 = arith.constant 0 : index
    %c6 = arith.constant 6 : index
    %c0_39 = arith.constant 0 : index
    %c0_40 = arith.constant 0 : index
    %30 = vector.load %arg2[%c0_38, %c6, %c0_39, %c0_40] : memref<1x8x8x128xf32, #tpu.memory_space<vmem>>, vector<1x1x8x128xf32>
    %31 = vector.shape_cast %30 : vector<1x1x8x128xf32> to vector<1x8x128xf32>
    %c0_41 = arith.constant 0 : index
    %c7 = arith.constant 7 : index
    %c0_42 = arith.constant 0 : index
    %c0_43 = arith.constant 0 : index
    %32 = vector.load %arg2[%c0_41, %c7, %c0_42, %c0_43] : memref<1x8x8x128xf32, #tpu.memory_space<vmem>>, vector<1x1x8x128xf32>
    %33 = vector.shape_cast %32 : vector<1x1x8x128xf32> to vector<1x8x128xf32>
    %34 = arith.maximumf %31, %33 : vector<1x8x128xf32>
    %c0_44 = arith.constant 0 : index
    %c5_45 = arith.constant 5 : index
    %c0_46 = arith.constant 0 : index
    %c0_47 = arith.constant 0 : index
    %35 = vector.load %arg2[%c0_44, %c5_45, %c0_46, %c0_47] : memref<1x8x8x128xf32, #tpu.memory_space<vmem>>, vector<1x1x8x128xf32>
    %36 = vector.shape_cast %35 : vector<1x1x8x128xf32> to vector<1x8x128xf32>
    %37 = arith.maximumf %34, %36 : vector<1x8x128xf32>
    %c0_48 = arith.constant 0 : index
    %c3_49 = arith.constant 3 : index
    %c0_50 = arith.constant 0 : index
    %c0_51 = arith.constant 0 : index
    %38 = vector.load %arg3[%c0_48, %c3_49, %c0_50, %c0_51] : memref<1x4x8x128xf32, #tpu.memory_space<vmem>>, vector<1x1x8x128xf32>
    %39 = vector.shape_cast %38 : vector<1x1x8x128xf32> to vector<1x8x128xf32>
    %40 = vector.shape_cast %37 : vector<1x8x128xf32> to vector<1x1x8x128xf32>
    tpu.vector_store %arg3[%c0_48, %c3_49, %c0_50, %c0_51], %40 {strides = array<i32>} : memref<1x4x8x128xf32, #tpu.memory_space<vmem>>, vector<1x1x8x128xf32>,
    return
  }
  func.func @transform_0(%arg0: i32, %arg1: i32) -> (i32, i32, i32, i32) {
    %c0_i32 = arith.constant 0 : i32
    %c0_i32_0 = arith.constant 0 : i32
    %c0_i32_1 = arith.constant 0 : i32
    return %arg0, %c0_i32, %arg1, %c0_i32_0 : i32, i32, i32, i32
  }
  func.func @transform_1(%arg0: i32, %arg1: i32) -> (i32, i32, i32, i32) {
    %c0_i32 = arith.constant 0 : i32
    %c0_i32_0 = arith.constant 0 : i32
    %c0_i32_1 = arith.constant 0 : i32
    return %arg0, %c0_i32, %arg1, %c0_i32_0 : i32, i32, i32, i32
  }
}

</mosaic_0001>

<llo_original>
// kernel: tpu_custom_call.1
$region0: #{tpu_custom_call.1}
  #allocation0 [shape = 'u32[]', space=smem, size = 0x4, offset = 0x4, fixed_abs, tag = 'smem constant byte address 0x4 - core index']
  #allocation1 [shape = 'u32[72,128]{1,0:T(1,128)}', space=vmem, size = 0x9000, scoped, tag = 'internal scratch']
  %s0 = inlined_call_operand.hbm [shape: f32[2,8,8,128], index: 0, kind: input, shape index: {}]
  %s1 = inlined_call_operand.hbm [shape: f32[2,4,8,128], index: 1, kind: output, shape index: {}]
  %s2 = sld [smem:[#allocation0]]
  $region41: #{tpu_custom_call.1} parent=0
    _
  %s4 = ssub.s32 1, %s2
  %s5 = scalar_select 0, %s4, %s2
  $region1: #{tpu_custom_call.1} parent=0
    #allocation2 [shape = 'u8[65536]{0}', space=vmem, size = 0x10000, scoped, tag = 'input window, operand 0']
    #allocation3 [shape = 's32[2]{0}', space=sflag, size = 0x8, scoped, tag = 'scoped memory for tpu_custom_call.1']
    #allocation4 [shape = 's32[2]{0}', space=sflag, size = 0x8, scoped, tag = 'scoped memory for tpu_custom_call.1']
    #allocation5 [shape = 'u8[32768]{0}', space=vmem, size = 0x8000, scoped, tag = 'output window, operand 0']
    %6 = vsyncpa [#allocation3], 0
    %s7 = scalar_lea.sflag [#allocation3], 1
    %8 = vsyncpa %s7, 0
    %9 = vsyncpa [#allocation4], 0
    %s10 = scalar_lea.sflag [#allocation4], 1
    %11 = vsyncpa %s10, 0
    loop: start=0, step=1, limit=4
    $region2: #{tpu_custom_call.1} parent=1 // loop_pre_header
      _
    $region3: #{tpu_custom_call.1} parent=1 // loop_header
      %s13 = sphi 0, %s17
      %p14 = scmp.ge.s32.totalorder %s13, 4
      %s20 = sphi 0, %s32
      %s21 = sphi 0, %s28
      %s22 = sphi 0, %s20
      %s23 = sphi 0, %s21
      %s24 = sphi 0, %s22
      %s25 = sphi 0, %s23
      %s37 = sphi 0, %s39
      %s40 = sphi 0, %s37
      %s41 = sphi 0, %s40
      %s57 = sphi 0, %s41
      %s65 = sphi 0, %s67
      %s68 = sphi 0, %s65
      %s69 = sphi 0, %s68
      %s85 = sphi 0, %s69
    $region4: #{tpu_custom_call.1} parent=1 // loop_header_branch
      %16 = sbr.rel (%p14) target = $region8
    $region5: #{tpu_custom_call.1} parent=1 // loop_body
      %s18 = ssub.s32 %s13, 1
      %s19 = ssub.s32 %s13, 2
      %s26 = sadd.s32 1, %s21
      %p27 = scmp.ge.s32.totalorder %s26, 1
      %s28 = scalar_select %p27, 0, %s26
      %s29 = sadd.s32 1, %s20
      %s30 = scalar_select %p27, %s29, %s20
      %p31 = scmp.ge.s32.totalorder %s30, 2
      %s32 = scalar_select %p31, 0, %s30
      %s33 = ssub.s32 %s20, %s32
      %s34 = ssub.s32 %s21, %s28
      %s35 = sor.u32 %s33, %s34
      %p36 = scmp.eq.s32.totalorder %s35, 0
      %s38 = sadd.s32 %s37, 1
      %s39 = scalar_select %p36, %s37, %s38
      %p42 = pneg %p36
      %p43 = scmp.eq.s32.totalorder %s13, 1
      %p44 = por %p42, %p43
      %p45 = scmp.ne.s32.totalorder %s37, %s40
      %p46 = scmp.eq.s32.totalorder %s13, 0
      %p47 = por %p45, %p46
      %p48 = scmp.ne.s32.totalorder %s37, %s40
      %p49 = scmp.eq.s32.totalorder %s18, 1
      %p50 = por %p48, %p49
      %p51 = scmp.ne.s32.totalorder %s40, %s41
      %p52 = scmp.eq.s32.totalorder %s18, 0
      %p53 = por %p51, %p52
      %p54 = scmp.ne.s32.totalorder %s40, %s41
      %p55 = scmp.eq.s32.totalorder %s19, 1
      %p56 = por %p54, %p55
      %p58 = scmp.ne.s32.totalorder %s41, %s57
      %p59 = scmp.eq.s32.totalorder %s19, 0
      %p60 = por %p58, %p59
      %s61 = ssub.s32 %s20, %s32
      %s62 = ssub.s32 %s21, %s28
      %s63 = sor.u32 %s61, %s62
      %p64 = scmp.eq.s32.totalorder %s63, 0
      %s66 = sadd.s32 %s65, 1
      %s67 = scalar_select %p64, %s65, %s66
      %p70 = pneg %p64
      %p71 = scmp.eq.s32.totalorder %s13, 1
      %p72 = por %p70, %p71
      %p73 = scmp.ne.s32.totalorder %s65, %s68
      %p74 = scmp.eq.s32.totalorder %s13, 0
      %p75 = por %p73, %p74
      %p76 = scmp.ne.s32.totalorder %s65, %s68
      %p77 = scmp.eq.s32.totalorder %s18, 1
      %p78 = por %p76, %p77
      %p79 = scmp.ne.s32.totalorder %s68, %s69
      %p80 = scmp.eq.s32.totalorder %s18, 0
      %p81 = por %p79, %p80
      %p82 = scmp.ne.s32.totalorder %s68, %s69
      %p83 = scmp.eq.s32.totalorder %s19, 1
      %p84 = por %p82, %p83
      %p86 = scmp.ne.s32.totalorder %s69, %s85
      %p87 = scmp.eq.s32.totalorder %s19, 0
      %p88 = por %p86, %p87
      %p89 = scmp.le.s32.totalorder 1, %s13
      %p90 = scmp.lt.s32.totalorder %s13, 3
      %p91 = pnand %p89, %p90
      %p92 = pneg %p91
      // Predicated region
      $region9: #{tpu_custom_call.1} parent=5 // pred_check
        _
      $region10: #{tpu_custom_call.1} parent=5 // pred_check_branch
        %94 = sbr.rel (%p91) target = $region12
      $region11: #{tpu_custom_call.1} parent=5 // pred_region
        %s95 = ssub.s32 %s13, 1
      $region12: #{tpu_custom_call.1} parent=5 // pred_fallthru
        _
      %p96 = scmp.lt.s32.totalorder %s13, 2
      // Predicated region
      $region13: #{tpu_custom_call.1} parent=5 // pred_check
        %p97 = pneg %p96
      $region14: #{tpu_custom_call.1} parent=5 // pred_check_branch
        %99 = sbr.rel (%p97) target = $region16
      $region15: #{tpu_custom_call.1} parent=5 // pred_region
        // Predicated region
        $region17: #{tpu_custom_call.1} parent=15 // pred_check
          %p100 = pneg %p47
        $region18: #{tpu_custom_call.1} parent=15 // pred_check_branch
          %102 = sbr.rel (%p100) target = $region20
        $region19: #{tpu_custom_call.1} parent=15 // pred_region
          %s103 = sand.u32 %s37, 1
          %s104 = scalar_lea.sflag [#allocation3], %s103
          %s105 = sand.u32 %s37, 1
          %s106 = smul.addr %s105, 64
          %s107 = scalar_lea.vmem [#allocation2], %s106
          %109 = vsyncadd %s104, 0
          %s110 = smul.addr %s20, 8
          %s111 = sadd.s32 %s21, %s110
          %s112 = smul.addr %s111, 8
          %s113 = scalar_lea.hbm %s0, %s112
          %s114 = sshll.u32 %s113, 4
          %s115 = int_to_ptr.hbm [resolvable:$true] %s114
          %s116 = sshll.u32 %s107, 4
          %s117 = int_to_ptr.vmem [resolvable:$true] %s116
          %122 = dma.hbm_to_vmem [thread:$0]  %s115, 1024, %s117, %s104, 128, 128, 8
        $region20: #{tpu_custom_call.1} parent=15 // pred_fallthru
          _
      $region16: #{tpu_custom_call.1} parent=5 // pred_fallthru
        _
      %p123 = scmp.le.s32.totalorder 1, %s13
      %p124 = scmp.lt.s32.totalorder %s13, 3
      %p125 = pnand %p123, %p124
      %p126 = pneg %p125
      // Predicated region
      $region21: #{tpu_custom_call.1} parent=5 // pred_check
        _
      $region22: #{tpu_custom_call.1} parent=5 // pred_check_branch
        %128 = sbr.rel (%p125) target = $region24
      $region23: #{tpu_custom_call.1} parent=5 // pred_region
        %s129 = ssub.s32 %s13, 1
        %s130 = sand.u32 %s40, 1
        %s131 = scalar_lea.sflag [#allocation3], %s130
        %s132 = sand.u32 %s40, 1
        %s133 = smul.addr %s132, 64
        %s134 = scalar_lea.vmem [#allocation2], %s133
        // Predicated region
        $region25: #{tpu_custom_call.1} parent=23 // pred_check
          %p135 = pneg %p53
        $region26: #{tpu_custom_call.1} parent=23 // pred_check_branch
          %137 = sbr.rel (%p135) target = $region28
        $region27: #{tpu_custom_call.1} parent=23 // pred_region
          %139 = dma.done %s131, 1024
        $region28: #{tpu_custom_call.1} parent=23 // pred_fallthru
          _
        %s140 = sand.u32 %s40, 1
        %s141 = scalar_lea.sflag [#allocation3], %s140
        %s142 = sand.u32 %s40, 1
        %s143 = smul.addr %s142, 64
        %s144 = scalar_lea.vmem [#allocation2], %s143
        %p145 = pneg %p53
        %p146 = pneg %p50
        %p147 = pneg %p81
        %p148 = pneg %p78
        %s149 = sand.u32 %s68, 1
        %s150 = scalar_lea.sflag [#allocation4], %s149
        %s151 = sand.u32 %s68, 1
        %s152 = smul.addr %s151, 32
        %s153 = scalar_lea.vmem [#allocation5], %s152
        %v154 = vld [vmem:[%s134] sm:$0xff]
        %s155 = scalar_lea.vmem %s134, 8 [#allocation2]
        %v156 = vld [vmem:[%s155] sm:$0xff]
        %v157 = vmax.f32 %v154, %v156
        %158 = vst [vmem:[%s153] sm:$0xff] %v157
        %s159 = scalar_lea.vmem %s134, 16 [#allocation2]
        %v160 = vld [vmem:[%s159] sm:$0xff]
        %s161 = scalar_lea.vmem %s134, 24 [#allocation2]
        %v162 = vld [vmem:[%s161] sm:$0xff]
        %v163 = vmax.f32 %v160, %v162
        %v164 = vld [vmem:[%s155] sm:$0xff]
        %v165 = vmax.f32 %v163, %v164
        %s166 = scalar_lea.vmem %s153, 8 [#allocation5]
        %167 = vst [vmem:[%s166] sm:$0xff] %v165
        %s168 = scalar_lea.vmem %s134, 32 [#allocation2]
        %v169 = vld [vmem:[%s168] sm:$0xff]
        %s170 = scalar_lea.vmem %s134, 40 [#allocation2]
        %v171 = vld [vmem:[%s170] sm:$0xff]
        %v172 = vmax.f32 %v169, %v171
        %v173 = vld [vmem:[%s161] sm:$0xff]
        %v174 = vmax.f32 %v172, %v173
        %s175 = scalar_lea.vmem %s153, 16 [#allocation5]
        %176 = vst [vmem:[%s175] sm:$0xff] %v174
        %s177 = scalar_lea.vmem %s134, 48 [#allocation2]
        %v178 = vld [vmem:[%s177] sm:$0xff]
        %s179 = scalar_lea.vmem %s134, 56 [#allocation2]
        %v180 = vld [vmem:[%s179] sm:$0xff]
        %v181 = vmax.f32 %v178, %v180
        %v182 = vld [vmem:[%s170] sm:$0xff]
        %v183 = vmax.f32 %v181, %v182
        %s184 = scalar_lea.vmem %s153, 24 [#allocation5]
        %185 = vst [vmem:[%s184] sm:$0xff] %v183
        %s186 = sand.u32 %s68, 1
        %s187 = scalar_lea.sflag [#allocation4], %s186
        %s188 = sand.u32 %s68, 1
        %s189 = smul.addr %s188, 32
        %s190 = scalar_lea.vmem [#allocation5], %s189
        // Predicated region
        $region29: #{tpu_custom_call.1} parent=23 // pred_check
          %p191 = pneg %p78
        $region30: #{tpu_custom_call.1} parent=23 // pred_check_branch
          %193 = sbr.rel (%p191) target = $region32
        $region31: #{tpu_custom_call.1} parent=23 // pred_region
          %195 = vsyncadd %s187, 0
          %s196 = smul.addr %s22, 4
          %s197 = sadd.s32 %s23, %s196
          %s198 = smul.addr %s197, 8
          %s199 = scalar_lea.hbm %s1, %s198
          %s200 = sshll.u32 %s190, 4
          %s201 = int_to_ptr.vmem [resolvable:$true] %s200
          %s202 = sshll.u32 %s199, 4
          %s203 = int_to_ptr.hbm [resolvable:$true] %s202
          %208 = dma.vmem_to_hbm [thread:$0]  %s201, 512, %s203, %s187, 128, 128, 8
        $region32: #{tpu_custom_call.1} parent=23 // pred_fallthru
          _
      $region24: #{tpu_custom_call.1} parent=5 // pred_fallthru
        _
      %p209 = scmp.le.s32.totalorder 2, %s13
      // Predicated region
      $region33: #{tpu_custom_call.1} parent=5 // pred_check
        %p210 = pneg %p209
      $region34: #{tpu_custom_call.1} parent=5 // pred_check_branch
        %212 = sbr.rel (%p210) target = $region36
      $region35: #{tpu_custom_call.1} parent=5 // pred_region
        %s213 = ssub.s32 %s13, 2
        // Predicated region
        $region37: #{tpu_custom_call.1} parent=35 // pred_check
          %p214 = pneg %p84
        $region38: #{tpu_custom_call.1} parent=35 // pred_check_branch
          %216 = sbr.rel (%p214) target = $region40
        $region39: #{tpu_custom_call.1} parent=35 // pred_region
          %s217 = sand.u32 %s69, 1
          %s218 = scalar_lea.sflag [#allocation4], %s217
          %s219 = sand.u32 %s69, 1
          %s220 = smul.addr %s219, 32
          %s221 = scalar_lea.vmem [#allocation5], %s220
          %223 = dma.done %s218, 512
        $region40: #{tpu_custom_call.1} parent=35 // pred_fallthru
          _
      $region36: #{tpu_custom_call.1} parent=5 // pred_fallthru
        _
    $region6: #{tpu_custom_call.1} parent=1 // loop_footer
      %s17 = sadd.s32 1, %s13
    $region7: #{tpu_custom_call.1} parent=1 // loop_footer_branch
      %12 = sbr.rel target = $region3
    $region8: #{tpu_custom_call.1} parent=1 // loop_exit
      _
    %224 = vsyncpa [#allocation3], 1
    %s225 = scalar_lea.sflag [#allocation3], 1
    %226 = vsyncpa %s225, 1
    %227 = vsyncpa [#allocation4], 1
    %s228 = scalar_lea.sflag [#allocation4], 1
    %229 = vsyncpa %s228, 1

</llo_original>
